<compile_context>
chip_gen: v6e
topology: v6e:2x2x1
jax: 0.10.0
libtpu: 0.0.40
codegen_flags: <defaults>
</compile_context>

<pallas_src>
import jax
import jax.numpy as jnp
from jax.experimental import pallas as pl
from jax.experimental.pallas import tpu as pltpu


def _round_up(x, m):
    return ((x + m - 1) // m) * m


def _cdiv(a, b):
    return -(-a // b)


# ---------------------------------------------------------------------------
# Kernels: one fused (tile_bv, D) x (D, Cp+Btp) matmul per v tile.
# pred and sim^T share the MXU pass and a single lane-dense output store;
# the bias row is zero over the sim columns so one add finalizes both.
# ---------------------------------------------------------------------------
def _fused_kernel(v_ref, rhs_ref, b_ref, out_ref):
    # Single K step: no accumulator scratch needed.
    acc = jax.lax.dot_general(
        v_ref[...], rhs_ref[...], (((1,), (0,)), ((), ())),
        preferred_element_type=jnp.float32)
    out_ref[...] = (acc + b_ref[...]).astype(out_ref.dtype)


def _fused_kernel_ksplit(v_ref, rhs_ref, b_ref, out_ref, acc_ref):
    k = pl.program_id(1)

    @pl.when(k == 0)
    def _init():
        acc_ref[...] = jnp.zeros_like(acc_ref)

    acc_ref[...] += jax.lax.dot_general(
        v_ref[...], rhs_ref[...], (((1,), (0,)), ((), ())),
        preferred_element_type=jnp.float32)

    @pl.when(k == pl.num_programs(1) - 1)
    def _finalize():
        out_ref[...] = (acc_ref[...] + b_ref[...]).astype(out_ref.dtype)


def _vmem_budget_bytes():
    # Generation-aware budget: ~75% of physical VMEM
    # (128 MiB on v5e/v6e, 64 MiB on v7x).  Conservative fallback if the
    # query is unavailable.
    try:
        cap = int(pltpu.get_tpu_info().vmem_capacity_bytes)
    except Exception:
        cap = 64 << 20
    return cap, (cap * 3) // 4


def linear_classifier_avt(a, v, t, fc_weight, fc_bias, *,
                          pretrained_text=True, use_pallas=None,
                          max_tile_k=None, out_dtype=jnp.float32):
    """Forward of LinearClassifierAVT given pre-encoded v, t features.

    a: unused (the PyTorch forward never touches `a`)
    v: (Bv, D) float32 - stand-in for v_encoder(v) output
    t: (Bt, 1, D) float32 - stand-in for t_encoder(t) output
    fc_weight: (C, D), fc_bias: (C,)
    Returns (pred: (Bv, C), similarity: (Bt, Bv)).
    """
    del a
    if pretrained_text:
        # torch's t.squeeze(); explicit axis so Bt == 1 keeps its batch dim.
        t = jnp.squeeze(t, axis=1)                        # (Bt, D)

    Bv, D = v.shape
    Bt = t.shape[0]
    C = fc_weight.shape[0]

    # ---- small-shape fallback: padding C/Bt to 128 lanes would dominate ----
    flops = 2 * Bv * D * (C + Bt)
    if use_pallas is None:
        use_pallas = flops >= (1 << 26)
    if not use_pallas:
        pred = v @ fc_weight.T + fc_bias
        sim = t @ v.T
        return pred, sim

    # ------------------------------ Pallas path -----------------------------
    cap_bytes, budget = _vmem_budget_bytes()

    Cp = _round_up(C, 128)
    Btp = _round_up(Bt, 128)
    Np = Cp + Btp                         # fused output width (lane-dense)
    Dp = _round_up(D, 128)
    out_bytes = jnp.dtype(out_dtype).itemsize

    # K (contraction) split: only when the (tile_k, Np) rhs stream (x2
    # buffers) would eat more than half the budget; otherwise keep the whole
    # rhs resident across the Bv grid (nk == 1, simpler kernel, no scratch).
    nk = 1
    while True:
        tile_k = _round_up(_cdiv(Dp, nk), 128)
        if 2 * tile_k * Np * 2 <= budget // 2 or tile_k == 128:
            break
        nk += 1
    if max_tile_k is not None:            # test hook / manual override
        tile_k = min(tile_k, max(128, _round_up(max_tile_k, 128)))
        nk = _cdiv(Dp, tile_k)
    Dpk = nk * tile_k
    ksplit = nk > 1

    def vmem_bytes(tile_bv):
        # Pallas double-buffers every input/output block, even with a
        # constant index_map, so count 2x across the board.
        v_b = 2 * tile_bv * tile_k * 2          # bf16 v tile
        rhs_b = 2 * tile_k * Np * 2             # bf16 fused rhs block
        b_b = 2 * Np * 4                        # f32 bias row
        o_b = 2 * tile_bv * Np * out_bytes      # output tile
        acc_b = tile_bv * Np * 4 if ksplit else 0
        return v_b + rhs_b + b_b + o_b + acc_b

    # Largest multiple of 16 (bf16 sublane packing) that fits the budget.
    tile_bv = min(512, _round_up(Bv, 16))
    while tile_bv > 16 and vmem_bytes(tile_bv) > budget:
        tile_bv -= 16
    # Ensure >= 2 Bv steps when there is enough work so the "parallel" axis
    # can shard across v7x's two TensorCores; keep a single step for small Bv.
    if Bv >= 128 and _round_up(Bv, 16) <= tile_bv:
        tile_bv = _round_up(_cdiv(Bv, 2), 16)

    assert tile_bv % 16 == 0 and tile_k % 128 == 0 and Np % 128 == 0

    Bvp = _round_up(Bv, tile_bv)
    grid_bv = Bvp // tile_bv

    # Pad + cast once in XLA (outside the kernel); W^T and t^T are fused into
    # a single pre-transposed, lane-dense rhs so both matmuls become one
    # straight (Bv, K) x (K, N) MXU feed.  Zero padding is inert.
    v_p = jnp.pad(v.astype(jnp.bfloat16), ((0, Bvp - Bv), (0, Dpk - D)))
    rhs = jnp.concatenate(
        [jnp.pad(fc_weight.astype(jnp.bfloat16).T, ((0, Dpk - D), (0, Cp - C))),
         jnp.pad(t.astype(jnp.bfloat16).T, ((0, Dpk - D), (0, Btp - Bt)))],
        axis=1)                                                 # (Dpk, Np)
    b_p = jnp.pad(fc_bias.astype(jnp.float32), (0, Np - C)).reshape(1, Np)

    cost = pl.CostEstimate(
        flops=2 * Bvp * Dpk * Np,
        transcendentals=0,
        bytes_accessed=int(v_p.size * 2 + rhs.size * 2 + b_p.size * 4
                           + Bvp * Np * out_bytes),
    )

    est = vmem_bytes(tile_bv)
    vmem_limit = int(min(cap_bytes, max(est * 5 // 4, 32 << 20)))

    if ksplit:
        grid = (grid_bv, nk)
        in_specs = [
            pl.BlockSpec((tile_bv, tile_k), lambda i, k: (i, k)),  # v tile
            pl.BlockSpec((tile_k, Np), lambda i, k: (k, 0)),       # rhs block
            pl.BlockSpec((1, Np), lambda i, k: (0, 0)),            # bias
        ]
        out_specs = pl.BlockSpec((tile_bv, Np), lambda i, k: (i, 0))
        scratch = [pltpu.VMEM((tile_bv, Np), jnp.float32)]
        dims = ("parallel", "arbitrary")
        kernel = _fused_kernel_ksplit
    else:
        grid = (grid_bv,)
        in_specs = [
            pl.BlockSpec((tile_bv, tile_k), lambda i: (i, 0)),     # v tile
            pl.BlockSpec((tile_k, Np), lambda i: (0, 0)),          # rhs (resident)
            pl.BlockSpec((1, Np), lambda i: (0, 0)),               # bias (resident)
        ]
        out_specs = pl.BlockSpec((tile_bv, Np), lambda i: (i, 0))
        scratch = []
        dims = ("parallel",)
        kernel = _fused_kernel

    out_p = pl.pallas_call(
        kernel,
        grid=grid,
        in_specs=in_specs,
        out_specs=out_specs,
        out_shape=jax.ShapeDtypeStruct((Bvp, Np), out_dtype),
        scratch_shapes=scratch,
        compiler_params=pltpu.CompilerParams(
            dimension_semantics=dims,
            vmem_limit_bytes=vmem_limit,
        ),
        cost_estimate=cost,
    )(v_p, rhs, b_p)

    pred = out_p[:Bv, :C].astype(jnp.float32)
    sim = out_p[:Bv, Cp:Cp + Bt].astype(jnp.float32).T   # (Bt, Bv) = t @ v^T
    return pred, sim


if __name__ == "__main__":
    key = jax.random.PRNGKey(0)
    keys = jax.random.split(key, 12)

    # ---- 1) module-consistent tiny shapes (auto -> XLA fallback path) -----
    #   num_modalities=3, model_dimension=32 -> fc in_features = 96
    num_modalities, model_dimension = 3, 32
    feature_dim = num_modalities * model_dimension
    num_classes, batch = 16, 8

    a = jax.random.normal(keys[0], (batch, feature_dim), jnp.float32)
    v = jax.random.normal(keys[1], (batch, feature_dim), jnp.float32)
    t = jax.random.normal(keys[2], (batch, 1, feature_dim), jnp.float32)
    bound = 1.0 / feature_dim ** 0.5
    fc_w = jax.random.uniform(keys[3], (num_classes, feature_dim),
                              minval=-bound, maxval=bound, dtype=jnp.float32)
    fc_b = jax.random.uniform(keys[4], (num_classes,),
                              minval=-bound, maxval=bound, dtype=jnp.float32)

    pred, sim = linear_classifier_avt(a, v, t, fc_w, fc_b)
    jax.block_until_ready((pred, sim))
    assert pred.shape == (batch, num_classes)
    assert sim.shape == (batch, batch)
    t_sq = jnp.squeeze(t, axis=1)
    assert jnp.allclose(pred, v @ fc_w.T + fc_b, atol=1e-5, rtol=1e-5)
    assert jnp.allclose(sim, t_sq @ v.T, atol=1e-5, rtol=1e-5)

    # ---- 2) forced Pallas path, unaligned moderate shapes (tests padding,
    #         fusion, and the >=2-step Bv grid) ------------------------------
    Bv2, D2, C2, Bt2 = 200, 384, 300, 40
    a2 = jnp.zeros((Bv2, D2), jnp.float32)
    v2 = jax.random.normal(keys[5], (Bv2, D2), jnp.float32)
    t2 = jax.random.normal(keys[6], (Bt2, 1, D2), jnp.float32)
    b2 = 1.0 / D2 ** 0.5
    w2 = jax.random.uniform(keys[7], (C2, D2), minval=-b2, maxval=b2,
                            dtype=jnp.float32)
    bias2 = jax.random.uniform(keys[8], (C2,), minval=-b2, maxval=b2,
                               dtype=jnp.float32)

    pred2, sim2 = linear_classifier_avt(a2, v2, t2, w2, bias2, use_pallas=True)
    jax.block_until_ready((pred2, sim2))
    assert pred2.shape == (Bv2, C2) and sim2.shape == (Bt2, Bv2)

    t2_sq = jnp.squeeze(t2, axis=1)
    v2_bf = v2.astype(jnp.bfloat16)
    t2_bf = t2_sq.astype(jnp.bfloat16)
    w2_bf = w2.astype(jnp.bfloat16)
    ref_pred_bf = jnp.dot(v2_bf, w2_bf.T,
                          preferred_element_type=jnp.float32) + bias2
    ref_sim_bf = jnp.dot(t2_bf, v2_bf.T, preferred_element_type=jnp.float32)
    assert jnp.allclose(pred2, ref_pred_bf, atol=5e-2, rtol=5e-3)
    assert jnp.allclose(sim2, ref_sim_bf, atol=5e-2, rtol=5e-3)
    # Loose parity with pure-f32 PyTorch semantics (bf16 input rounding).
    assert jnp.allclose(pred2, v2 @ w2.T + bias2, atol=1.0, rtol=0.05)
    assert jnp.allclose(sim2, t2_sq @ v2.T, atol=1.0, rtol=0.05)

    # ---- 3) forced K-split (exercises the accumulator kernel path) --------
    pred3, sim3 = linear_classifier_avt(a2, v2, t2, w2, bias2,
                                        use_pallas=True, max_tile_k=128)
    jax.block_until_ready((pred3, sim3))
    assert jnp.allclose(pred3, pred2, atol=1e-2, rtol=1e-3)
    assert jnp.allclose(sim3, sim2, atol=1e-2, rtol=1e-3)

    print("KERNEL_OK")
</pallas_src>

<mosaic_0001>
module attributes {stable_mosaic.version = 11 : i64} {
  func.func @_fused_kernel(%arg0: i32, %arg1: memref<112x384xbf16, #tpu.memory_space<vmem>>, %arg2: memref<384x512xbf16, #tpu.memory_space<vmem>>, %arg3: memref<1x512xf32, #tpu.memory_space<vmem>>, %arg4: memref<112x512xf32, #tpu.memory_space<vmem>>) attributes {dimension_semantics = [#tpu.dimension_semantics<parallel>], iteration_bounds = array<i64: 2>, scalar_prefetch = 0 : i64, scratch_operands = 0 : i64, tpu.core_type = #tpu.core_type<tc>, window_params = [{transform_indices = @transform_0, window_bounds = array<i64: 112, 384>}, {pipeline_mode = #tpu.pipeline_mode<synchronous>, transform_indices = @transform_1, window_bounds = array<i64: 384, 512>}, {pipeline_mode = #tpu.pipeline_mode<synchronous>, transform_indices = @transform_2, window_bounds = array<i64: 1, 512>}, {transform_indices = @transform_3, window_bounds = array<i64: 112, 512>}]} {
    %c0 = arith.constant 0 : index
    %c0_0 = arith.constant 0 : index
    %0 = vector.load %arg1[%c0, %c0_0] : memref<112x384xbf16, #tpu.memory_space<vmem>>, vector<112x384xbf16>
    %c0_1 = arith.constant 0 : index
    %c0_2 = arith.constant 0 : index
    %1 = vector.load %arg2[%c0_1, %c0_2] : memref<384x512xbf16, #tpu.memory_space<vmem>>, vector<384x512xbf16>
    %cst = arith.constant dense<0.000000e+00> : vector<112x512xf32>
    %2 = tpu.matmul %0, %1, %cst {dimension_numbers = #tpu.dot_dimension_numbers<[1], [0], [0], [1], [0, 0, 1, 1], [], []>} : vector<112x384xbf16>, vector<384x512xbf16>, vector<112x512xf32> -> vector<112x512xf32>
    %c0_3 = arith.constant 0 : index
    %c0_4 = arith.constant 0 : index
    %3 = vector.load %arg3[%c0_3, %c0_4] : memref<1x512xf32, #tpu.memory_space<vmem>>, vector<1x512xf32>
    %4 = vector.broadcast %3 : vector<1x512xf32> to vector<112x512xf32>
    %5 = arith.addf %2, %4 : vector<112x512xf32>
    %c0_5 = arith.constant 0 : index
    %c0_6 = arith.constant 0 : index
    %6 = vector.load %arg4[%c0_5, %c0_6] : memref<112x512xf32, #tpu.memory_space<vmem>>, vector<112x512xf32>
    tpu.vector_store %arg4[%c0_5, %c0_6], %5 {strides = array<i32>} : memref<112x512xf32, #tpu.memory_space<vmem>>, vector<112x512xf32>,
    return
  }
  func.func @transform_0(%arg0: i32) -> (i32, i32) {
    %c0_i32 = arith.constant 0 : i32
    %c0_i32_0 = arith.constant 0 : i32
    return %arg0, %c0_i32 : i32, i32
  }
  func.func @transform_1(%arg0: i32) -> (i32, i32) {
    %c0_i32 = arith.constant 0 : i32
    %c0_i32_0 = arith.constant 0 : i32
    %c0_i32_1 = arith.constant 0 : i32
    return %c0_i32, %c0_i32_0 : i32, i32
  }
  func.func @transform_2(%arg0: i32) -> (i32, i32) {
    %c0_i32 = arith.constant 0 : i32
    %c0_i32_0 = arith.constant 0 : i32
    %c0_i32_1 = arith.constant 0 : i32
    return %c0_i32, %c0_i32_0 : i32, i32
  }
  func.func @transform_3(%arg0: i32) -> (i32, i32) {
    %c0_i32 = arith.constant 0 : i32
    %c0_i32_0 = arith.constant 0 : i32
    return %arg0, %c0_i32 : i32, i32
  }
}

</mosaic_0001>

<llo_original>
// kernel: tpu_custom_call.1
$region0: #{tpu_custom_call.1}
  #allocation0 [shape = 'u32[]', space=smem, size = 0x4, offset = 0x4, fixed_abs, tag = 'smem constant byte address 0x4 - core index']
  #allocation1 [shape = 'u32[144,128]{1,0:T(1,128)}', space=vmem, size = 0x12000, scoped, tag = 'internal scratch']
  %s0 = inlined_call_operand.hbm [shape: bf16[224,384], index: 0, kind: input, shape index: {}]
  %s1 = inlined_call_operand.hbm [shape: bf16[384,512], index: 1, kind: input, shape index: {}]
  %s2 = inlined_call_operand.hbm [shape: f32[1,512], index: 2, kind: input, shape index: {}]
  %s3 = inlined_call_operand.hbm [shape: f32[224,512], index: 3, kind: output, shape index: {}]
  %s4 = sld [smem:[#allocation0]]
  $region57: #{tpu_custom_call.1} parent=0
    _
  %s6 = ssub.s32 1, %s4
  %s7 = scalar_select 0, %s6, %s4
  $region1: #{tpu_custom_call.1} parent=0
    #allocation2 [shape = 'u8[172032]{0}', space=vmem, size = 0x2a000, scoped, tag = 'input window, operand 0']
    #allocation3 [shape = 's32[2]{0}', space=sflag, size = 0x8, scoped, tag = 'scoped memory for tpu_custom_call.1']
    #allocation4 [shape = 's32[2]{0}', space=sflag, size = 0x8, scoped, tag = 'scoped memory for tpu_custom_call.1']
    #allocation5 [shape = 'u8[393216]{0}', space=vmem, size = 0x60000, scoped, tag = 'input window, operand 1, single buffered']
    #allocation6 [shape = 's32[1]{0}', space=sflag, size = 0x4, scoped, tag = 'scoped memory for tpu_custom_call.1']
    #allocation7 [shape = 'u8[2048]{0}', space=vmem, size = 0x800, scoped, tag = 'input window, operand 2, single buffered']
    #allocation8 [shape = 'u8[458752]{0}', space=vmem, size = 0x70000, scoped, tag = 'output window, operand 0']
    %8 = vsyncpa [#allocation3], 0
    %s9 = scalar_lea.sflag [#allocation3], 1
    %10 = vsyncpa %s9, 0
    %11 = vsyncpa [#allocation6], 0
    %12 = vsyncpa [#allocation4], 0
    %s13 = scalar_lea.sflag [#allocation4], 1
    %14 = vsyncpa %s13, 0
    loop: start=0, step=1, limit=4
    $region2: #{tpu_custom_call.1} parent=1 // loop_pre_header
      _
    $region3: #{tpu_custom_call.1} parent=1 // loop_header
      %s16 = sphi 0, %s20
      %p17 = scmp.ge.s32.totalorder %s16, 4
      %s26 = sphi 0, %s28
      %s29 = sphi 0, %s26
      %s30 = sphi 0, %s29
      %s46 = sphi 0, %s30
      %s50 = sphi 0, %s50
      %s52 = sphi 0, %s50
      %s53 = sphi 0, %s52
      %s67 = sphi 0, %s53
      %s71 = sphi 0, %s71
      %s73 = sphi 0, %s71
      %s74 = sphi 0, %s73
      %s88 = sphi 0, %s74
      %s94 = sphi 0, %s96
      %s97 = sphi 0, %s94
      %s98 = sphi 0, %s97
      %s114 = sphi 0, %s98
    $region4: #{tpu_custom_call.1} parent=1 // loop_header_branch
      %19 = sbr.rel (%p17) target = $region8
    $region5: #{tpu_custom_call.1} parent=1 // loop_body
      %s21 = ssub.s32 %s16, 1
      %s22 = ssub.s32 %s16, 2
      %s23 = sadd.s32 %s16, 1
      %s24 = ssub.s32 %s16, %s23
      %p25 = scmp.eq.s32.totalorder %s24, 0
      %s27 = sadd.s32 %s26, 1
      %s28 = scalar_select %p25, %s26, %s27
      %p31 = pneg %p25
      %p32 = scmp.eq.s32.totalorder %s16, 1
      %p33 = por %p31, %p32
      %p34 = scmp.ne.s32.totalorder %s26, %s29
      %p35 = scmp.eq.s32.totalorder %s16, 0
      %p36 = por %p34, %p35
      %p37 = scmp.ne.s32.totalorder %s26, %s29
      %p38 = scmp.eq.s32.totalorder %s21, 1
      %p39 = por %p37, %p38
      %p40 = scmp.ne.s32.totalorder %s29, %s30
      %p41 = scmp.eq.s32.totalorder %s21, 0
      %p42 = por %p40, %p41
      %p43 = scmp.ne.s32.totalorder %s29, %s30
      %p44 = scmp.eq.s32.totalorder %s22, 1
      %p45 = por %p43, %p44
      %p47 = scmp.ne.s32.totalorder %s30, %s46
      %p48 = scmp.eq.s32.totalorder %s22, 0
      %p49 = por %p47, %p48
      %s51 = sadd.s32 %s50, 1
      %p54 = scmp.eq.s32.totalorder %s16, 1
      %p55 = scmp.ne.s32.totalorder %s50, %s52
      %p56 = scmp.eq.s32.totalorder %s16, 0
      %p57 = por %p55, %p56
      %p58 = scmp.ne.s32.totalorder %s50, %s52
      %p59 = scmp.eq.s32.totalorder %s21, 1
      %p60 = por %p58, %p59
      %p61 = scmp.ne.s32.totalorder %s52, %s53
      %p62 = scmp.eq.s32.totalorder %s21, 0
      %p63 = por %p61, %p62
      %p64 = scmp.ne.s32.totalorder %s52, %s53
      %p65 = scmp.eq.s32.totalorder %s22, 1
      %p66 = por %p64, %p65
      %p68 = scmp.ne.s32.totalorder %s53, %s67
      %p69 = scmp.eq.s32.totalorder %s22, 0
      %p70 = por %p68, %p69
      %s72 = sadd.s32 %s71, 1
      %p75 = scmp.eq.s32.totalorder %s16, 1
      %p76 = scmp.ne.s32.totalorder %s71, %s73
      %p77 = scmp.eq.s32.totalorder %s16, 0
      %p78 = por %p76, %p77
      %p79 = scmp.ne.s32.totalorder %s71, %s73
      %p80 = scmp.eq.s32.totalorder %s21, 1
      %p81 = por %p79, %p80
      %p82 = scmp.ne.s32.totalorder %s73, %s74
      %p83 = scmp.eq.s32.totalorder %s21, 0
      %p84 = por %p82, %p83
      %p85 = scmp.ne.s32.totalorder %s73, %s74
      %p86 = scmp.eq.s32.totalorder %s22, 1
      %p87 = por %p85, %p86
      %p89 = scmp.ne.s32.totalorder %s74, %s88
      %p90 = scmp.eq.s32.totalorder %s22, 0
      %p91 = por %p89, %p90
      %s92 = ssub.s32 %s16, %s23
      %p93 = scmp.eq.s32.totalorder %s92, 0
      %s95 = sadd.s32 %s94, 1
      %s96 = scalar_select %p93, %s94, %s95
      %p99 = pneg %p93
      %p100 = scmp.eq.s32.totalorder %s16, 1
      %p101 = por %p99, %p100
      %p102 = scmp.ne.s32.totalorder %s94, %s97
      %p103 = scmp.eq.s32.totalorder %s16, 0
      %p104 = por %p102, %p103
      %p105 = scmp.ne.s32.totalorder %s94, %s97
      %p106 = scmp.eq.s32.totalorder %s21, 1
      %p107 = por %p105, %p106
      %p108 = scmp.ne.s32.totalorder %s97, %s98
      %p109 = scmp.eq.s32.totalorder %s21, 0
      %p110 = por %p108, %p109
      %p111 = scmp.ne.s32.totalorder %s97, %s98
      %p112 = scmp.eq.s32.totalorder %s22, 1
      %p113 = por %p111, %p112
      %p115 = scmp.ne.s32.totalorder %s98, %s114
      %p116 = scmp.eq.s32.totalorder %s22, 0
      %p117 = por %p115, %p116
      %p118 = scmp.le.s32.totalorder 1, %s16
      %p119 = scmp.lt.s32.totalorder %s16, 3
      %p120 = pnand %p118, %p119
      %p121 = pneg %p120
      // Predicated region
      $region9: #{tpu_custom_call.1} parent=5 // pred_check
        _
      $region10: #{tpu_custom_call.1} parent=5 // pred_check_branch
        %123 = sbr.rel (%p120) target = $region12
      $region11: #{tpu_custom_call.1} parent=5 // pred_region
        %s124 = ssub.s32 %s16, 1
        // Predicated region
        $region13: #{tpu_custom_call.1} parent=11 // pred_check
          %p125 = pneg %p63
        $region14: #{tpu_custom_call.1} parent=11 // pred_check_branch
          %127 = sbr.rel (%p125) target = $region16
        $region15: #{tpu_custom_call.1} parent=11 // pred_region
          %s129 = ssub.s32 12288, 12288
          %130 = vsyncadd [#allocation6], %s129
          %s131 = sshll.u32 [#allocation5], 4
          %s132 = int_to_ptr.vmem [resolvable:$true] %s131
          %137 = dma.hbm_to_vmem [thread:$0]  %s1, 12288, %s132, [#allocation6], 256, 256, 16
        $region16: #{tpu_custom_call.1} parent=11 // pred_fallthru
          _
        // Predicated region
        $region17: #{tpu_custom_call.1} parent=11 // pred_check
          %p138 = pneg %p84
        $region18: #{tpu_custom_call.1} parent=11 // pred_check_branch
          %140 = sbr.rel (%p138) target = $region20
        $region19: #{tpu_custom_call.1} parent=11 // pred_region
          %s142 = ssub.s32 64, 64
          %143 = vsyncadd [#allocation6], %s142
          %s145 = sshll.u32 [#allocation7], 4
          %s146 = int_to_ptr.vmem [resolvable:$true] %s145
          %148 = dma.hbm_to_vmem [thread:$0]  %s2, 64, %s146, [#allocation6]
        $region20: #{tpu_custom_call.1} parent=11 // pred_fallthru
          _
      $region12: #{tpu_custom_call.1} parent=5 // pred_fallthru
        _
      %p149 = scmp.lt.s32.totalorder %s16, 2
      // Predicated region
      $region21: #{tpu_custom_call.1} parent=5 // pred_check
        %p150 = pneg %p149
      $region22: #{tpu_custom_call.1} parent=5 // pred_check_branch
        %152 = sbr.rel (%p150) target = $region24
      $region23: #{tpu_custom_call.1} parent=5 // pred_region
        // Predicated region
        $region25: #{tpu_custom_call.1} parent=23 // pred_check
          %p153 = pneg %p36
        $region26: #{tpu_custom_call.1} parent=23 // pred_check_branch
          %155 = sbr.rel (%p153) target = $region28
        $region27: #{tpu_custom_call.1} parent=23 // pred_region
          %s156 = sand.u32 %s26, 1
          %s157 = scalar_lea.sflag [#allocation3], %s156
          %s158 = sand.u32 %s26, 1
          %s159 = smul.addr %s158, 168
          %s160 = scalar_lea.vmem [#allocation2], %s159
          %s161 = smul.u32 14, %s16
          %s163 = ssub.s32 2688, 2688
          %164 = vsyncadd %s157, %s163
          %s165 = smul.addr %s161, 3
          %s166 = smul.addr %s165, 64
          %s167 = scalar_lea.hbm %s0, %s166
          %s168 = sshll.u32 %s160, 4
          %s169 = int_to_ptr.vmem [resolvable:$true] %s168
          %174 = dma.hbm_to_vmem [thread:$0]  %s167, 2688, %s169, %s157, 192, 192, 12
        $region28: #{tpu_custom_call.1} parent=23 // pred_fallthru
          _
      $region24: #{tpu_custom_call.1} parent=5 // pred_fallthru
        _
      %p175 = scmp.le.s32.totalorder 1, %s16
      %p176 = scmp.lt.s32.totalorder %s16, 3
      %p177 = pnand %p175, %p176
      %p178 = pneg %p177
      // Predicated region
      $region29: #{tpu_custom_call.1} parent=5 // pred_check
        _
      $region30: #{tpu_custom_call.1} parent=5 // pred_check_branch
        %180 = sbr.rel (%p177) target = $region32
      $region31: #{tpu_custom_call.1} parent=5 // pred_region
        %s181 = ssub.s32 %s16, 1
        %s182 = sand.u32 %s29, 1
        %s183 = scalar_lea.sflag [#allocation3], %s182
        %s184 = sand.u32 %s29, 1
        %s185 = smul.addr %s184, 168
        %s186 = scalar_lea.vmem [#allocation2], %s185
        // Predicated region
        $region33: #{tpu_custom_call.1} parent=31 // pred_check
          %p187 = pneg %p42
        $region34: #{tpu_custom_call.1} parent=31 // pred_check_branch
          %189 = sbr.rel (%p187) target = $region36
        $region35: #{tpu_custom_call.1} parent=31 // pred_region
          %190 = dma.done %s183, 2688
        $region36: #{tpu_custom_call.1} parent=31 // pred_fallthru
          _
        // Predicated region
        $region37: #{tpu_custom_call.1} parent=31 // pred_check
          %p191 = pneg %p63
        $region38: #{tpu_custom_call.1} parent=31 // pred_check_branch
          %193 = sbr.rel (%p191) target = $region40
        $region39: #{tpu_custom_call.1} parent=31 // pred_region
          %194 = dma.done [#allocation6], 12288
        $region40: #{tpu_custom_call.1} parent=31 // pred_fallthru
          _
        // Predicated region
        $region41: #{tpu_custom_call.1} parent=31 // pred_check
          %p195 = pneg %p84
        $region42: #{tpu_custom_call.1} parent=31 // pred_check_branch
          %197 = sbr.rel (%p195) target = $region44
        $region43: #{tpu_custom_call.1} parent=31 // pred_region
          %198 = dma.done [#allocation6], 64
        $region44: #{tpu_custom_call.1} parent=31 // pred_fallthru
          _
        %s199 = sand.u32 %s29, 1
        %s200 = scalar_lea.sflag [#allocation3], %s199
        %s201 = sand.u32 %s29, 1
        %s202 = smul.addr %s201, 168
        %s203 = scalar_lea.vmem [#allocation2], %s202
        %p204 = pneg %p42
        %p205 = pneg %p39
        %p206 = pneg %p63
        %p207 = pneg %p60
        %p208 = pneg %p84
        %p209 = pneg %p81
        %p210 = pneg %p110
        %p211 = pneg %p107
        %s212 = sand.u32 %s97, 1
        %s213 = scalar_lea.sflag [#allocation4], %s212
        %s214 = sand.u32 %s97, 1
        %s215 = smul.addr %s214, 448
        %s216 = scalar_lea.vmem [#allocation8], %s215
        %s217 = smul.u32 14, %s21
        %s218 = smul.u32 14, %s21
        %v220 = vld [vmem:[%s186] sm:$0xff]
        %v221 = vld [vmem:[%s186 + $0x8] sm:$0xf]
        %v222 = vld [vmem:[%s186 + $0xc] sm:$0xff]
        %v223 = vld [vmem:[%s186 + $0x14] sm:$0xf]
        %v224 = vld [vmem:[%s186 + $0x18] sm:$0xff]
        %v225 = vld [vmem:[%s186 + $0x20] sm:$0xf]
        %v226 = vld [vmem:[%s186 + $0x24] sm:$0xff]
        %v227 = vld [vmem:[%s186 + $0x2c] sm:$0xf]
        %v228 = vld [vmem:[%s186 + $0x30] sm:$0xff]
        %v229 = vld [vmem:[%s186 + $0x38] sm:$0xf]
        %v230 = vld [vmem:[%s186 + $0x3c] sm:$0xff]
        %v231 = vld [vmem:[%s186 + $0x44] sm:$0xf]
        %v232 = vld [vmem:[%s186 + $0x48] sm:$0xff]
        %v233 = vld [vmem:[%s186 + $0x50] sm:$0xf]
        %v234 = vld [vmem:[%s186 + $0x54] sm:$0xff]
        %v235 = vld [vmem:[%s186 + $0x5c] sm:$0xf]
        %v236 = vld [vmem:[%s186 + $0x60] sm:$0xff]
        %v237 = vld [vmem:[%s186 + $0x68] sm:$0xf]
        %v238 = vld [vmem:[%s186 + $0x6c] sm:$0xff]
        %v239 = vld [vmem:[%s186 + $0x74] sm:$0xf]
        %v240 = vld [vmem:[%s186 + $0x78] sm:$0xff]
        %v241 = vld [vmem:[%s186 + $0x80] sm:$0xf]
        %v242 = vld [vmem:[%s186 + $0x84] sm:$0xff]
        %v243 = vld [vmem:[%s186 + $0x8c] sm:$0xf]
        %v244 = vld [vmem:[%s186 + $0x90] sm:$0xff]
        %v245 = vld [vmem:[%s186 + $0x98] sm:$0xf]
        %v246 = vld [vmem:[%s186 + $0x9c] sm:$0xff]
        %v247 = vld [vmem:[%s186 + $0xa4] sm:$0xf]
        %v248 = vld [vmem:[#allocation5] sm:$0xff]
        %v249 = vld [vmem:[#allocation5 + $0x8] sm:$0xff]
        %v250 = vld [vmem:[#allocation5 + $0x10] sm:$0xff]
        %v251 = vld [vmem:[#allocation5 + $0x18] sm:$0xff]
        %v252 = vld [vmem:[#allocation5 + $0x20] sm:$0xff]
        %v253 = vld [vmem:[#allocation5 + $0x28] sm:$0xff]
        %v254 = vld [vmem:[#allocation5 + $0x30] sm:$0xff]
        %v255 = vld [vmem:[#allocation5 + $0x38] sm:$0xff]
        %v256 = vld [vmem:[#allocation5 + $0x40] sm:$0xff]
        %v257 = vld [vmem:[#allocation5 + $0x48] sm:$0xff]
        %v258 = vld [vmem:[#allocation5 + $0x50] sm:$0xff]
        %v259 = vld [vmem:[#allocation5 + $0x58] sm:$0xff]
        %v260 = vld [vmem:[#allocation5 + $0x60] sm:$0xff]
        %v261 = vld [vmem:[#allocation5 + $0x68] sm:$0xff]
        %v262 = vld [vmem:[#allocation5 + $0x70] sm:$0xff]
        %v263 = vld [vmem:[#allocation5 + $0x78] sm:$0xff]
        %v264 = vld [vmem:[#allocation5 + $0x80] sm:$0xff]
        %v265 = vld [vmem:[#allocation5 + $0x88] sm:$0xff]
        %v266 = vld [vmem:[#allocation5 + $0x90] sm:$0xff]
        %v267 = vld [vmem:[#allocation5 + $0x98] sm:$0xff]
        %v268 = vld [vmem:[#allocation5 + $0xa0] sm:$0xff]
        %v269 = vld [vmem:[#allocation5 + $0xa8] sm:$0xff]
        %v270 = vld [vmem:[#allocation5 + $0xb0] sm:$0xff]
        %v271 = vld [vmem:[#allocation5 + $0xb8] sm:$0xff]
        %v272 = vld [vmem:[#allocation5 + $0xc0] sm:$0xff]
        %v273 = vld [vmem:[#allocation5 + $0xc8] sm:$0xff]
        %v274 = vld [vmem:[#allocation5 + $0xd0] sm:$0xff]
        %v275 = vld [vmem:[#allocation5 + $0xd8] sm:$0xff]
        %v276 = vld [vmem:[#allocation5 + $0xe0] sm:$0xff]
        %v277 = vld [vmem:[#allocation5 + $0xe8] sm:$0xff]
        %v278 = vld [vmem:[#allocation5 + $0xf0] sm:$0xff]
        %v279 = vld [vmem:[#allocation5 + $0xf8] sm:$0xff]
        %v280 = vld [vmem:[#allocation5 + $0x100] sm:$0xff]
        %v281 = vld [vmem:[#allocation5 + $0x108] sm:$0xff]
        %v282 = vld [vmem:[#allocation5 + $0x110] sm:$0xff]
        %v283 = vld [vmem:[#allocation5 + $0x118] sm:$0xff]
        %v284 = vld [vmem:[#allocation5 + $0x120] sm:$0xff]
        %v285 = vld [vmem:[#allocation5 + $0x128] sm:$0xff]
        %v286 = vld [vmem:[#allocation5 + $0x130] sm:$0xff]
        %v287 = vld [vmem:[#allocation5 + $0x138] sm:$0xff]
        %v288 = vld [vmem:[#allocation5 + $0x140] sm:$0xff]
        %v289 = vld [vmem:[#allocation5 + $0x148] sm:$0xff]
        %v290 = vld [vmem:[#allocation5 + $0x150] sm:$0xff]
        %v291 = vld [vmem:[#allocation5 + $0x158] sm:$0xff]
        %v292 = vld [vmem:[#allocation5 + $0x160] sm:$0xff]
        %v293 = vld [vmem:[#allocation5 + $0x168] sm:$0xff]
        %v294 = vld [vmem:[#allocation5 + $0x170] sm:$0xff]
        %v295 = vld [vmem:[#allocation5 + $0x178] sm:$0xff]
        %v296 = vld [vmem:[#allocation5 + $0x180] sm:$0xff]
        %v297 = vld [vmem:[#allocation5 + $0x188] sm:$0xff]
        %v298 = vld [vmem:[#allocation5 + $0x190] sm:$0xff]
        %v299 = vld [vmem:[#allocation5 + $0x198] sm:$0xff]
        %v300 = vld [vmem:[#allocation5 + $0x1a0] sm:$0xff]
        %v301 = vld [vmem:[#allocation5 + $0x1a8] sm:$0xff]
        %v302 = vld [vmem:[#allocation5 + $0x1b0] sm:$0xff]
        %v303 = vld [vmem:[#allocation5 + $0x1b8] sm:$0xff]
        %v304 = vld [vmem:[#allocation5 + $0x1c0] sm:$0xff]
        %v305 = vld [vmem:[#allocation5 + $0x1c8] sm:$0xff]
        %v306 = vld [vmem:[#allocation5 + $0x1d0] sm:$0xff]
        %v307 = vld [vmem:[#allocation5 + $0x1d8] sm:$0xff]
        %v308 = vld [vmem:[#allocation5 + $0x1e0] sm:$0xff]
        %v309 = vld [vmem:[#allocation5 + $0x1e8] sm:$0xff]
        %v310 = vld [vmem:[#allocation5 + $0x1f0] sm:$0xff]
        %v311 = vld [vmem:[#allocation5 + $0x1f8] sm:$0xff]
        %v312 = vld [vmem:[#allocation5 + $0x200] sm:$0xff]
        %v313 = vld [vmem:[#allocation5 + $0x208] sm:$0xff]
        %v314 = vld [vmem:[#allocation5 + $0x210] sm:$0xff]
        %v315 = vld [vmem:[#allocation5 + $0x218] sm:$0xff]
        %v316 = vld [vmem:[#allocation5 + $0x220] sm:$0xff]
        %v317 = vld [vmem:[#allocation5 + $0x228] sm:$0xff]
        %v318 = vld [vmem:[#allocation5 + $0x230] sm:$0xff]
        %v319 = vld [vmem:[#allocation5 + $0x238] sm:$0xff]
        %v320 = vld [vmem:[#allocation5 + $0x240] sm:$0xff]
        %v321 = vld [vmem:[#allocation5 + $0x248] sm:$0xff]
        %v322 = vld [vmem:[#allocation5 + $0x250] sm:$0xff]
        %v323 = vld [vmem:[#allocation5 + $0x258] sm:$0xff]
        %v324 = vld [vmem:[#allocation5 + $0x260] sm:$0xff]
        %v325 = vld [vmem:[#allocation5 + $0x268] sm:$0xff]
        %v326 = vld [vmem:[#allocation5 + $0x270] sm:$0xff]
        %v327 = vld [vmem:[#allocation5 + $0x278] sm:$0xff]
        %v328 = vld [vmem:[#allocation5 + $0x280] sm:$0xff]
        %v329 = vld [vmem:[#allocation5 + $0x288] sm:$0xff]
        %v330 = vld [vmem:[#allocation5 + $0x290] sm:$0xff]
        %v331 = vld [vmem:[#allocation5 + $0x298] sm:$0xff]
        %v332 = vld [vmem:[#allocation5 + $0x2a0] sm:$0xff]
        %v333 = vld [vmem:[#allocation5 + $0x2a8] sm:$0xff]
        %v334 = vld [vmem:[#allocation5 + $0x2b0] sm:$0xff]
        %v335 = vld [vmem:[#allocation5 + $0x2b8] sm:$0xff]
        %v336 = vld [vmem:[#allocation5 + $0x2c0] sm:$0xff]
        %v337 = vld [vmem:[#allocation5 + $0x2c8] sm:$0xff]
        %v338 = vld [vmem:[#allocation5 + $0x2d0] sm:$0xff]
        %v339 = vld [vmem:[#allocation5 + $0x2d8] sm:$0xff]
        %v340 = vld [vmem:[#allocation5 + $0x2e0] sm:$0xff]
        %v341 = vld [vmem:[#allocation5 + $0x2e8] sm:$0xff]
        %v342 = vld [vmem:[#allocation5 + $0x2f0] sm:$0xff]
        %v343 = vld [vmem:[#allocation5 + $0x2f8] sm:$0xff]
        %v344 = vld [vmem:[#allocation7] sm:$0xf]
        %v346 = vlaneseq
        %v347 = vshrl.u32 %v346, 7
        %v348 = vsub.s32 0, %v347
        %v349 = vrot.slane %v344, %v348
        %v350 = vlaneseq
        %v351 = vshrl.u32 %v350, 7
        %v352 = vsub.s32 1, %v351
        %v353 = vrot.slane %v344, %v352
        %v354 = vlaneseq
        %v355 = vshrl.u32 %v354, 7
        %v356 = vsub.s32 2, %v355
        %v357 = vrot.slane %v344, %v356
        %v358 = vlaneseq
        %v359 = vshrl.u32 %v358, 7
        %v360 = vsub.s32 3, %v359
        %v361 = vrot.slane %v344, %v360
        %v394 = vunpack.c.l.b16 %v220
        %v395 = vunpack.c.h.b16 %v220
        %v396 = vunpack.c.l.b16 %v221
        %v397 = vunpack.c.l.b16 %v222
        %v398 = vunpack.c.h.b16 %v222
        %v399 = vunpack.c.l.b16 %v223
        %v400 = vunpack.c.l.b16 %v224
        %v401 = vunpack.c.h.b16 %v224
        %v402 = vunpack.c.l.b16 %v225
        %v403 = vunpack.c.l.b16 %v226
        %v404 = vunpack.c.h.b16 %v226
        %v405 = vunpack.c.l.b16 %v227
        %v406 = vunpack.c.l.b16 %v228
        %v407 = vunpack.c.h.b16 %v228
        %v408 = vunpack.c.l.b16 %v229
        %v409 = vunpack.c.l.b16 %v230
        %v410 = vunpack.c.h.b16 %v230
        %v411 = vunpack.c.l.b16 %v231
        %v412 = vunpack.c.l.b16 %v232
        %v413 = vunpack.c.h.b16 %v232
        %v414 = vunpack.c.l.b16 %v233
        %v415 = vunpack.c.l.b16 %v234
        %v416 = vunpack.c.h.b16 %v234
        %v417 = vunpack.c.l.b16 %v235
        %v418 = vunpack.c.l.b16 %v236
        %v419 = vunpack.c.h.b16 %v236
        %v420 = vunpack.c.l.b16 %v237
        %v421 = vunpack.c.l.b16 %v238
        %v422 = vunpack.c.h.b16 %v238
        %v423 = vunpack.c.l.b16 %v239
        %v424 = vunpack.c.l.b16 %v240
        %v425 = vunpack.c.h.b16 %v240
        %v426 = vunpack.c.l.b16 %v241
        %v427 = vunpack.c.l.b16 %v242
        %v428 = vunpack.c.h.b16 %v242
        %v429 = vunpack.c.l.b16 %v243
        %v430 = vunpack.c.l.b16 %v244
        %v431 = vunpack.c.h.b16 %v244
        %v432 = vunpack.c.l.b16 %v245
        %v433 = vunpack.c.l.b16 %v246
        %v434 = vunpack.c.h.b16 %v246
        %v435 = vunpack.c.l.b16 %v247
        %v436 = vpack.c.b16 %v397, %v394
        %v437 = vpack.c.b16 %v398, %v395
        %v438 = vpack.c.b16 %v399, %v396
        %v439 = vpack.c.b16 %v403, %v400
        %v440 = vpack.c.b16 %v404, %v401
        %v441 = vpack.c.b16 %v405, %v402
        %v442 = vpack.c.b16 %v409, %v406
        %v443 = vpack.c.b16 %v410, %v407
        %v444 = vpack.c.b16 %v411, %v408
        %v445 = vpack.c.b16 %v415, %v412
        %v446 = vpack.c.b16 %v416, %v413
        %v447 = vpack.c.b16 %v417, %v414
        %v448 = vpack.c.b16 %v421, %v418
        %v449 = vpack.c.b16 %v422, %v419
        %v450 = vpack.c.b16 %v423, %v420
        %v451 = vpack.c.b16 %v427, %v424
        %v452 = vpack.c.b16 %v428, %v425
        %v453 = vpack.c.b16 %v429, %v426
        %v454 = vpack.c.b16 %v433, %v430
        %v455 = vpack.c.b16 %v434, %v431
        %v456 = vpack.c.b16 %v435, %v432
        %v574 = vunpack.c.l.b16 %v248
        %v575 = vunpack.c.h.b16 %v248
        %v576 = vunpack.c.l.b16 %v249
        %v577 = vunpack.c.h.b16 %v249
        %v578 = vunpack.c.l.b16 %v250
        %v579 = vunpack.c.h.b16 %v250
        %v580 = vunpack.c.l.b16 %v251
        %v581 = vunpack.c.h.b16 %v251
        %v582 = vunpack.c.l.b16 %v252
        %v583 = vunpack.c.h.b16 %v252
        %v584 = vunpack.c.l.b16 %v253
        %v585 = vunpack.c.h.b16 %v253
        %v586 = vunpack.c.l.b16 %v254
        %v587 = vunpack.c.h.b16 %v254
        %v588 = vunpack.c.l.b16 %v255
        %v589 = vunpack.c.h.b16 %v255
        %v590 = vunpack.c.l.b16 %v256
        %v591 = vunpack.c.h.b16 %v256
        %v592 = vunpack.c.l.b16 %v257
        %v593 = vunpack.c.h.b16 %v257
        %v594 = vunpack.c.l.b16 %v258
        %v595 = vunpack.c.h.b16 %v258
        %v596 = vunpack.c.l.b16 %v259
        %v597 = vunpack.c.h.b16 %v259
        %v598 = vunpack.c.l.b16 %v260
        %v599 = vunpack.c.h.b16 %v260
        %v600 = vunpack.c.l.b16 %v261
        %v601 = vunpack.c.h.b16 %v261
        %v602 = vunpack.c.l.b16 %v262
        %v603 = vunpack.c.h.b16 %v262
        %v604 = vunpack.c.l.b16 %v263
        %v605 = vunpack.c.h.b16 %v263
        %v606 = vunpack.c.l.b16 %v264
        %v607 = vunpack.c.h.b16 %v264
        %v608 = vunpack.c.l.b16 %v265
        %v609 = vunpack.c.h.b16 %v265
        %v610 = vunpack.c.l.b16 %v266
        %v611 = vunpack.c.h.b16 %v266
        %v612 = vunpack.c.l.b16 %v267
        %v613 = vunpack.c.h.b16 %v267
        %v614 = vunpack.c.l.b16 %v268
        %v615 = vunpack.c.h.b16 %v268
        %v616 = vunpack.c.l.b16 %v269
        %v617 = vunpack.c.h.b16 %v269
        %v618 = vunpack.c.l.b16 %v270
        %v619 = vunpack.c.h.b16 %v270
        %v620 = vunpack.c.l.b16 %v271
        %v621 = vunpack.c.h.b16 %v271
        %v622 = vunpack.c.l.b16 %v272
        %v623 = vunpack.c.h.b16 %v272
        %v624 = vunpack.c.l.b16 %v273
        %v625 = vunpack.c.h.b16 %v273
        %v626 = vunpack.c.l.b16 %v274
        %v627 = vunpack.c.h.b16 %v274
        %v628 = vunpack.c.l.b16 %v275
        %v629 = vunpack.c.h.b16 %v275
        %v630 = vunpack.c.l.b16 %v276
        %v631 = vunpack.c.h.b16 %v276
        %v632 = vunpack.c.l.b16 %v277
        %v633 = vunpack.c.h.b16 %v277
        %v634 = vunpack.c.l.b16 %v278
        %v635 = vunpack.c.h.b16 %v278
        %v636 = vunpack.c.l.b16 %v279
        %v637 = vunpack.c.h.b16 %v279
        %v638 = vunpack.c.l.b16 %v280
        %v639 = vunpack.c.h.b16 %v280
        %v640 = vunpack.c.l.b16 %v281
        %v641 = vunpack.c.h.b16 %v281
        %v642 = vunpack.c.l.b16 %v282
        %v643 = vunpack.c.h.b16 %v282
        %v644 = vunpack.c.l.b16 %v283
        %v645 = vunpack.c.h.b16 %v283
        %v646 = vunpack.c.l.b16 %v284
        %v647 = vunpack.c.h.b16 %v284
        %v648 = vunpack.c.l.b16 %v285
        %v649 = vunpack.c.h.b16 %v285
        %v650 = vunpack.c.l.b16 %v286
        %v651 = vunpack.c.h.b16 %v286
        %v652 = vunpack.c.l.b16 %v287
        %v653 = vunpack.c.h.b16 %v287
        %v654 = vunpack.c.l.b16 %v288
        %v655 = vunpack.c.h.b16 %v288
        %v656 = vunpack.c.l.b16 %v289
        %v657 = vunpack.c.h.b16 %v289
        %v658 = vunpack.c.l.b16 %v290
        %v659 = vunpack.c.h.b16 %v290
        %v660 = vunpack.c.l.b16 %v291
        %v661 = vunpack.c.h.b16 %v291
        %v662 = vunpack.c.l.b16 %v292
        %v663 = vunpack.c.h.b16 %v292
        %v664 = vunpack.c.l.b16 %v293
        %v665 = vunpack.c.h.b16 %v293
        %v666 = vunpack.c.l.b16 %v294
        %v667 = vunpack.c.h.b16 %v294
        %v668 = vunpack.c.l.b16 %v295
        %v669 = vunpack.c.h.b16 %v295
        %v670 = vunpack.c.l.b16 %v296
        %v671 = vunpack.c.h.b16 %v296
        %v672 = vunpack.c.l.b16 %v297
        %v673 = vunpack.c.h.b16 %v297
        %v674 = vunpack.c.l.b16 %v298
        %v675 = vunpack.c.h.b16 %v298
        %v676 = vunpack.c.l.b16 %v299
        %v677 = vunpack.c.h.b16 %v299
        %v678 = vunpack.c.l.b16 %v300
        %v679 = vunpack.c.h.b16 %v300
        %v680 = vunpack.c.l.b16 %v301
        %v681 = vunpack.c.h.b16 %v301
        %v682 = vunpack.c.l.b16 %v302
        %v683 = vunpack.c.h.b16 %v302
        %v684 = vunpack.c.l.b16 %v303
        %v685 = vunpack.c.h.b16 %v303
        %v686 = vunpack.c.l.b16 %v304
        %v687 = vunpack.c.h.b16 %v304
        %v688 = vunpack.c.l.b16 %v305
        %v689 = vunpack.c.h.b16 %v305
        %v690 = vunpack.c.l.b16 %v306
        %v691 = vunpack.c.h.b16 %v306
        %v692 = vunpack.c.l.b16 %v307
        %v693 = vunpack.c.h.b16 %v307
        %v694 = vunpack.c.l.b16 %v308
        %v695 = vunpack.c.h.b16 %v308
        %v696 = vunpack.c.l.b16 %v309
        %v697 = vunpack.c.h.b16 %v309
        %v698 = vunpack.c.l.b16 %v310
        %v699 = vunpack.c.h.b16 %v310
        %v700 = vunpack.c.l.b16 %v311
        %v701 = vunpack.c.h.b16 %v311
        %v702 = vunpack.c.l.b16 %v312
        %v703 = vunpack.c.h.b16 %v312
        %v704 = vunpack.c.l.b16 %v313
        %v705 = vunpack.c.h.b16 %v313
        %v706 = vunpack.c.l.b16 %v314
        %v707 = vunpack.c.h.b16 %v314
        %v708 = vunpack.c.l.b16 %v315
        %v709 = vunpack.c.h.b16 %v315
        %v710 = vunpack.c.l.b16 %v316
        %v711 = vunpack.c.h.b16 %v316
        %v712 = vunpack.c.l.b16 %v317
        %v713 = vunpack.c.h.b16 %v317
        %v714 = vunpack.c.l.b16 %v318
        %v715 = vunpack.c.h.b16 %v318
        %v716 = vunpack.c.l.b16 %v319
        %v717 = vunpack.c.h.b16 %v319
        %v718 = vunpack.c.l.b16 %v320
        %v719 = vunpack.c.h.b16 %v320
        %v720 = vunpack.c.l.b16 %v321
        %v721 = vunpack.c.h.b16 %v321
        %v722 = vunpack.c.l.b16 %v322
        %v723 = vunpack.c.h.b16 %v322
        %v724 = vunpack.c.l.b16 %v323
        %v725 = vunpack.c.h.b16 %v323
        %v726 = vunpack.c.l.b16 %v324
        %v727 = vunpack.c.h.b16 %v324
        %v728 = vunpack.c.l.b16 %v325
        %v729 = vunpack.c.h.b16 %v325
        %v730 = vunpack.c.l.b16 %v326
        %v731 = vunpack.c.h.b16 %v326
        %v732 = vunpack.c.l.b16 %v327
        %v733 = vunpack.c.h.b16 %v327
        %v734 = vunpack.c.l.b16 %v328
        %v735 = vunpack.c.h.b16 %v328
        %v736 = vunpack.c.l.b16 %v329
        %v737 = vunpack.c.h.b16 %v329
        %v738 = vunpack.c.l.b16 %v330
        %v739 = vunpack.c.h.b16 %v330
        %v740 = vunpack.c.l.b16 %v331
        %v741 = vunpack.c.h.b16 %v331
        %v742 = vunpack.c.l.b16 %v332
        %v743 = vunpack.c.h.b16 %v332
        %v744 = vunpack.c.l.b16 %v333
        %v745 = vunpack.c.h.b16 %v333
        %v746 = vunpack.c.l.b16 %v334
        %v747 = vunpack.c.h.b16 %v334
        %v748 = vunpack.c.l.b16 %v335
        %v749 = vunpack.c.h.b16 %v335
        %v750 = vunpack.c.l.b16 %v336
        %v751 = vunpack.c.h.b16 %v336
        %v752 = vunpack.c.l.b16 %v337
        %v753 = vunpack.c.h.b16 %v337
        %v754 = vunpack.c.l.b16 %v338
        %v755 = vunpack.c.h.b16 %v338
        %v756 = vunpack.c.l.b16 %v339
        %v757 = vunpack.c.h.b16 %v339
        %v758 = vunpack.c.l.b16 %v340
        %v759 = vunpack.c.h.b16 %v340
        %v760 = vunpack.c.l.b16 %v341
        %v761 = vunpack.c.h.b16 %v341
        %v762 = vunpack.c.l.b16 %v342
        %v763 = vunpack.c.h.b16 %v342
        %v764 = vunpack.c.l.b16 %v343
        %v765 = vunpack.c.h.b16 %v343
        %v766 = vpack.c.b16 %v578, %v574
        %v767 = vpack.c.b16 %v579, %v575
        %v768 = vpack.c.b16 %v580, %v576
        %v769 = vpack.c.b16 %v581, %v577
        %v770 = vpack.c.b16 %v586, %v582
        %v771 = vpack.c.b16 %v587, %v583
        %v772 = vpack.c.b16 %v588, %v584
        %v773 = vpack.c.b16 %v589, %v585
        %v774 = vpack.c.b16 %v594, %v590
        %v775 = vpack.c.b16 %v595, %v591
        %v776 = vpack.c.b16 %v596, %v592
        %v777 = vpack.c.b16 %v597, %v593
        %v778 = vpack.c.b16 %v602, %v598
        %v779 = vpack.c.b16 %v603, %v599
        %v780 = vpack.c.b16 %v604, %v600
        %v781 = vpack.c.b16 %v605, %v601
        %v782 = vpack.c.b16 %v610, %v606
        %v783 = vpack.c.b16 %v611, %v607
        %v784 = vpack.c.b16 %v612, %v608
        %v785 = vpack.c.b16 %v613, %v609
        %v786 = vpack.c.b16 %v618, %v614
        %v787 = vpack.c.b16 %v619, %v615
        %v788 = vpack.c.b16 %v620, %v616
        %v789 = vpack.c.b16 %v621, %v617
        %v790 = vpack.c.b16 %v626, %v622
        %v791 = vpack.c.b16 %v627, %v623
        %v792 = vpack.c.b16 %v628, %v624
        %v793 = vpack.c.b16 %v629, %v625
        %v794 = vpack.c.b16 %v634, %v630
        %v795 = vpack.c.b16 %v635, %v631
        %v796 = vpack.c.b16 %v636, %v632
        %v797 = vpack.c.b16 %v637, %v633
        %v798 = vpack.c.b16 %v642, %v638
        %v799 = vpack.c.b16 %v643, %v639
        %v800 = vpack.c.b16 %v644, %v640
        %v801 = vpack.c.b16 %v645, %v641
        %v802 = vpack.c.b16 %v650, %v646
        %v803 = vpack.c.b16 %v651, %v647
        %v804 = vpack.c.b16 %v652, %v648
        %v805 = vpack.c.b16 %v653, %v649
        %v806 = vpack.c.b16 %v658, %v654
        %v807 = vpack.c.b16 %v659, %v655
        %v808 = vpack.c.b16 %v660, %v656
        %v809 = vpack.c.b16 %v661, %v657
        %v810 = vpack.c.b16 %v666, %v662
        %v811 = vpack.c.b16 %v667, %v663
        %v812 = vpack.c.b16 %v668, %v664
        %v813 = vpack.c.b16 %v669, %v665
        %v814 = vpack.c.b16 %v674, %v670
        %v815 = vpack.c.b16 %v675, %v671
        %v816 = vpack.c.b16 %v676, %v672
        %v817 = vpack.c.b16 %v677, %v673
        %v818 = vpack.c.b16 %v682, %v678
        %v819 = vpack.c.b16 %v683, %v679
        %v820 = vpack.c.b16 %v684, %v680
        %v821 = vpack.c.b16 %v685, %v681
        %v822 = vpack.c.b16 %v690, %v686
        %v823 = vpack.c.b16 %v691, %v687
        %v824 = vpack.c.b16 %v692, %v688
        %v825 = vpack.c.b16 %v693, %v689
        %v826 = vpack.c.b16 %v698, %v694
        %v827 = vpack.c.b16 %v699, %v695
        %v828 = vpack.c.b16 %v700, %v696
        %v829 = vpack.c.b16 %v701, %v697
        %v830 = vpack.c.b16 %v706, %v702
        %v831 = vpack.c.b16 %v707, %v703
        %v832 = vpack.c.b16 %v708, %v704
        %v833 = vpack.c.b16 %v709, %v705
        %v834 = vpack.c.b16 %v714, %v710
        %v835 = vpack.c.b16 %v715, %v711
        %v836 = vpack.c.b16 %v716, %v712
        %v837 = vpack.c.b16 %v717, %v713
        %v838 = vpack.c.b16 %v722, %v718
        %v839 = vpack.c.b16 %v723, %v719
        %v840 = vpack.c.b16 %v724, %v720
        %v841 = vpack.c.b16 %v725, %v721
        %v842 = vpack.c.b16 %v730, %v726
        %v843 = vpack.c.b16 %v731, %v727
        %v844 = vpack.c.b16 %v732, %v728
        %v845 = vpack.c.b16 %v733, %v729
        %v846 = vpack.c.b16 %v738, %v734
        %v847 = vpack.c.b16 %v739, %v735
        %v848 = vpack.c.b16 %v740, %v736
        %v849 = vpack.c.b16 %v741, %v737
        %v850 = vpack.c.b16 %v746, %v742
        %v851 = vpack.c.b16 %v747, %v743
        %v852 = vpack.c.b16 %v748, %v744
        %v853 = vpack.c.b16 %v749, %v745
        %v854 = vpack.c.b16 %v754, %v750
        %v855 = vpack.c.b16 %v755, %v751
        %v856 = vpack.c.b16 %v756, %v752
        %v857 = vpack.c.b16 %v757, %v753
        %v858 = vpack.c.b16 %v762, %v758
        %v859 = vpack.c.b16 %v763, %v759
        %v860 = vpack.c.b16 %v764, %v760
        %v861 = vpack.c.b16 %v765, %v761
        %958 = vmatprep.subr.bf16.mxu0 %v795
        %959 = vmatpush1.bf16.msra.mxu0 %v794
        %960 = vmatprep.subr.bf16.mxu0 %v791
        %961 = vmatpush1.bf16.msra.mxu0 %v790
        %962 = vmatprep.subr.bf16.mxu0 %v787
        %963 = vmatpush1.bf16.msra.mxu0 %v786
        %964 = vmatprep.subr.bf16.mxu0 %v783
        %965 = vmatpush1.bf16.msra.mxu0 %v782
        %966 = vmatprep.subr.bf16.mxu0 %v779
        %967 = vmatpush1.bf16.msra.mxu0 %v778
        %968 = vmatprep.subr.bf16.mxu0 %v775
        %969 = vmatpush1.bf16.msra.mxu0 %v774
        %970 = vmatprep.subr.bf16.mxu0 %v771
        %971 = vmatpush1.bf16.msra.mxu0 %v770
        %972 = vmatprep.subr.bf16.mxu0 %v767
        %973 = vmatpush1.bf16.msra.mxu0 %v766
        %974 = vmatprep.subr.bf16.mxu0 %v827
        %975 = vmatpush2.bf16.msra.mxu0 %v826
        %976 = vmatprep.subr.bf16.mxu0 %v823
        %977 = vmatpush2.bf16.msra.mxu0 %v822
        %978 = vmatprep.subr.bf16.mxu0 %v819
        %979 = vmatpush2.bf16.msra.mxu0 %v818
        %980 = vmatprep.subr.bf16.mxu0 %v815
        %981 = vmatpush2.bf16.msra.mxu0 %v814
        %982 = vmatprep.subr.bf16.mxu0 %v811
        %983 = vmatpush2.bf16.msra.mxu0 %v810
        %984 = vmatprep.subr.bf16.mxu0 %v807
        %985 = vmatpush2.bf16.msra.mxu0 %v806
        %986 = vmatprep.subr.bf16.mxu0 %v803
        %987 = vmatpush2.bf16.msra.mxu0 %v802
        %988 = vmatprep.subr.bf16.mxu0 %v799
        %989 = vmatpush2.bf16.msra.mxu0 %v798
        %990 = vmatprep.mubr.bf16.mxu0 %v437
        %991 = vmatmul.mubr.bf16.gmra.mxu0 %v436
        %v992 = vpop.f32.mrf.mxu0
        %v993 = vadd.f32 %v349, %v992
        %v994 = vpop.f32.mrf.mxu0
        %v995 = vadd.f32 %v353, %v994
        %v996 = vpop.f32.mrf.mxu0
        %v997 = vadd.f32 %v349, %v996
        %v998 = vpop.f32.mrf.mxu0
        %v999 = vadd.f32 %v353, %v998
        %1000 = vmatprep.mubr.bf16.mxu0 %v440
        %1001 = vmatmul.mubr.bf16.gmra.mxu0 %v439
        %v1002 = vpop.f32.mrf.mxu0
        %v1003 = vadd.f32 %v349, %v1002
        %v1004 = vpop.f32.mrf.mxu0
        %v1005 = vadd.f32 %v353, %v1004
        %v1006 = vpop.f32.mrf.mxu0
        %v1007 = vadd.f32 %v349, %v1006
        %v1008 = vpop.f32.mrf.mxu0
        %v1009 = vadd.f32 %v353, %v1008
        %1010 = vmatprep.mubr.bf16.mxu0 %v443
        %1011 = vmatmul.mubr.bf16.gmra.mxu0 %v442
        %v1012 = vpop.f32.mrf.mxu0
        %v1013 = vadd.f32 %v349, %v1012
        %v1014 = vpop.f32.mrf.mxu0
        %v1015 = vadd.f32 %v353, %v1014
        %v1016 = vpop.f32.mrf.mxu0
        %v1017 = vadd.f32 %v349, %v1016
        %v1018 = vpop.f32.mrf.mxu0
        %v1019 = vadd.f32 %v353, %v1018
        %1020 = vmatprep.mubr.bf16.mxu0 %v446
        %1021 = vmatmul.mubr.bf16.gmra.mxu0 %v445
        %v1022 = vpop.f32.mrf.mxu0
        %v1023 = vadd.f32 %v349, %v1022
        %v1024 = vpop.f32.mrf.mxu0
        %v1025 = vadd.f32 %v353, %v1024
        %v1026 = vpop.f32.mrf.mxu0
        %v1027 = vadd.f32 %v349, %v1026
        %v1028 = vpop.f32.mrf.mxu0
        %v1029 = vadd.f32 %v353, %v1028
        %1030 = vmatprep.mubr.bf16.mxu0 %v449
        %1031 = vmatmul.mubr.bf16.gmra.mxu0 %v448
        %v1032 = vpop.f32.mrf.mxu0
        %v1033 = vadd.f32 %v349, %v1032
        %v1034 = vpop.f32.mrf.mxu0
        %v1035 = vadd.f32 %v353, %v1034
        %v1036 = vpop.f32.mrf.mxu0
        %v1037 = vadd.f32 %v349, %v1036
        %v1038 = vpop.f32.mrf.mxu0
        %v1039 = vadd.f32 %v353, %v1038
        %1040 = vmatprep.mubr.bf16.mxu0 %v452
        %1041 = vmatmul.mubr.bf16.gmra.mxu0 %v451
        %v1042 = vpop.f32.mrf.mxu0
        %v1043 = vadd.f32 %v349, %v1042
        %v1044 = vpop.f32.mrf.mxu0
        %v1045 = vadd.f32 %v353, %v1044
        %v1046 = vpop.f32.mrf.mxu0
        %v1047 = vadd.f32 %v349, %v1046
        %v1048 = vpop.f32.mrf.mxu0
        %v1049 = vadd.f32 %v353, %v1048
        %1050 = vmatprep.mubr.bf16.mxu0 %v455
        %1051 = vmatmul.mubr.bf16.gmra.mxu0 %v454
        %v1052 = vpop.f32.mrf.mxu0
        %v1053 = vadd.f32 %v349, %v1052
        %v1054 = vpop.f32.mrf.mxu0
        %v1055 = vadd.f32 %v353, %v1054
        %v1056 = vpop.f32.mrf.mxu0
        %v1057 = vadd.f32 %v349, %v1056
        %v1058 = vpop.f32.mrf.mxu0
        %v1059 = vadd.f32 %v353, %v1058
        %1060 = vdwg.mxu0
        %1061 = vmatprep.subr.bf16.mxu0 %v859
        %1062 = vmatpush1.bf16.msra.mxu0 %v858
        %1063 = vmatprep.subr.bf16.mxu0 %v855
        %1064 = vmatpush1.bf16.msra.mxu0 %v854
        %1065 = vmatprep.subr.bf16.mxu0 %v851
        %1066 = vmatpush1.bf16.msra.mxu0 %v850
        %1067 = vmatprep.subr.bf16.mxu0 %v847
        %1068 = vmatpush1.bf16.msra.mxu0 %v846
        %1069 = vmatprep.subr.bf16.mxu0 %v843
        %1070 = vmatpush1.bf16.msra.mxu0 %v842
        %1071 = vmatprep.subr.bf16.mxu0 %v839
        %1072 = vmatpush1.bf16.msra.mxu0 %v838
        %1073 = vmatprep.subr.bf16.mxu0 %v835
        %1074 = vmatpush1.bf16.msra.mxu0 %v834
        %1075 = vmatprep.subr.bf16.mxu0 %v831
        %1076 = vmatpush1.bf16.msra.mxu0 %v830
        %1077 = vmatprep.subr.bf16.mxu0 0
        %1078 = vmatpush2.bf16.msra.mxu0 0
        %1079 = vmatprep.subr.bf16.mxu0 0
        %1080 = vmatpush2.bf16.msra.mxu0 0
        %1081 = vmatprep.subr.bf16.mxu0 0
        %1082 = vmatpush2.bf16.msra.mxu0 0
        %1083 = vmatprep.subr.bf16.mxu0 0
        %1084 = vmatpush2.bf16.msra.mxu0 0
        %1085 = vmatprep.subr.bf16.mxu0 0
        %1086 = vmatpush2.bf16.msra.mxu0 0
        %1087 = vmatprep.subr.bf16.mxu0 0
        %1088 = vmatpush2.bf16.msra.mxu0 0
        %1089 = vmatprep.subr.bf16.mxu0 0
        %1090 = vmatpush2.bf16.msra.mxu0 0
        %1091 = vmatprep.subr.bf16.mxu0 0
        %1092 = vmatpush2.bf16.msra.mxu0 0
        %1093 = vmatprep.mubr.bf16.mxu0 0
        %1094 = vmatmul.mubr.bf16.gmra.mxu0 %v438
        %v1095 = vpop.f32.mrf.mxu0
        %v1096 = vadd.f32 %v993, %v1095
        %v1097 = vpop.f32.mrf.mxu0
        %v1098 = vadd.f32 %v995, %v1097
        %v1099 = vpop.f32.mrf.mxu0
        %v1100 = vadd.f32 %v997, %v1099
        %v1101 = vpop.f32.mrf.mxu0
        %v1102 = vadd.f32 %v999, %v1101
        %1103 = vmatprep.mubr.bf16.mxu0 0
        %1104 = vmatmul.mubr.bf16.gmra.mxu0 %v441
        %v1105 = vpop.f32.mrf.mxu0
        %v1106 = vadd.f32 %v1003, %v1105
        %v1107 = vpop.f32.mrf.mxu0
        %v1108 = vadd.f32 %v1005, %v1107
        %v1109 = vpop.f32.mrf.mxu0
        %v1110 = vadd.f32 %v1007, %v1109
        %v1111 = vpop.f32.mrf.mxu0
        %v1112 = vadd.f32 %v1009, %v1111
        %1113 = vmatprep.mubr.bf16.mxu0 0
        %1114 = vmatmul.mubr.bf16.gmra.mxu0 %v444
        %v1115 = vpop.f32.mrf.mxu0
        %v1116 = vadd.f32 %v1013, %v1115
        %v1117 = vpop.f32.mrf.mxu0
        %v1118 = vadd.f32 %v1015, %v1117
        %v1119 = vpop.f32.mrf.mxu0
        %v1120 = vadd.f32 %v1017, %v1119
        %v1121 = vpop.f32.mrf.mxu0
        %v1122 = vadd.f32 %v1019, %v1121
        %1123 = vmatprep.mubr.bf16.mxu0 0
        %1124 = vmatmul.mubr.bf16.gmra.mxu0 %v447
        %v1125 = vpop.f32.mrf.mxu0
        %v1126 = vadd.f32 %v1023, %v1125
        %v1127 = vpop.f32.mrf.mxu0
        %v1128 = vadd.f32 %v1025, %v1127
        %v1129 = vpop.f32.mrf.mxu0
        %v1130 = vadd.f32 %v1027, %v1129
        %v1131 = vpop.f32.mrf.mxu0
        %v1132 = vadd.f32 %v1029, %v1131
        %1133 = vmatprep.mubr.bf16.mxu0 0
        %1134 = vmatmul.mubr.bf16.gmra.mxu0 %v450
        %v1135 = vpop.f32.mrf.mxu0
        %v1136 = vadd.f32 %v1033, %v1135
        %v1137 = vpop.f32.mrf.mxu0
        %v1138 = vadd.f32 %v1035, %v1137
        %v1139 = vpop.f32.mrf.mxu0
        %v1140 = vadd.f32 %v1037, %v1139
        %v1141 = vpop.f32.mrf.mxu0
        %v1142 = vadd.f32 %v1039, %v1141
        %1143 = vmatprep.mubr.bf16.mxu0 0
        %1144 = vmatmul.mubr.bf16.gmra.mxu0 %v453
        %v1145 = vpop.f32.mrf.mxu0
        %v1146 = vadd.f32 %v1043, %v1145
        %v1147 = vpop.f32.mrf.mxu0
        %v1148 = vadd.f32 %v1045, %v1147
        %v1149 = vpop.f32.mrf.mxu0
        %v1150 = vadd.f32 %v1047, %v1149
        %v1151 = vpop.f32.mrf.mxu0
        %v1152 = vadd.f32 %v1049, %v1151
        %1153 = vmatprep.mubr.bf16.mxu0 0
        %1154 = vmatmul.mubr.bf16.gmra.mxu0 %v456
        %v1155 = vpop.f32.mrf.mxu0
        %v1156 = vadd.f32 %v1053, %v1155
        %v1157 = vpop.f32.mrf.mxu0
        %v1158 = vadd.f32 %v1055, %v1157
        %v1159 = vpop.f32.mrf.mxu0
        %v1160 = vadd.f32 %v1057, %v1159
        %v1161 = vpop.f32.mrf.mxu0
        %v1162 = vadd.f32 %v1059, %v1161
        %1163 = vdwg.mxu0
        %1164 = vmatprep.subr.bf16.mxu0 %v797
        %1165 = vmatpush1.bf16.msra.mxu0 %v796
        %1166 = vmatprep.subr.bf16.mxu0 %v793
        %1167 = vmatpush1.bf16.msra.mxu0 %v792
        %1168 = vmatprep.subr.bf16.mxu0 %v789
        %1169 = vmatpush1.bf16.msra.mxu0 %v788
        %1170 = vmatprep.subr.bf16.mxu0 %v785
        %1171 = vmatpush1.bf16.msra.mxu0 %v784
        %1172 = vmatprep.subr.bf16.mxu0 %v781
        %1173 = vmatpush1.bf16.msra.mxu0 %v780
        %1174 = vmatprep.subr.bf16.mxu0 %v777
        %1175 = vmatpush1.bf16.msra.mxu0 %v776
        %1176 = vmatprep.subr.bf16.mxu0 %v773
        %1177 = vmatpush1.bf16.msra.mxu0 %v772
        %1178 = vmatprep.subr.bf16.mxu0 %v769
        %1179 = vmatpush1.bf16.msra.mxu0 %v768
        %1180 = vmatprep.subr.bf16.mxu0 %v829
        %1181 = vmatpush2.bf16.msra.mxu0 %v828
        %1182 = vmatprep.subr.bf16.mxu0 %v825
        %1183 = vmatpush2.bf16.msra.mxu0 %v824
        %1184 = vmatprep.subr.bf16.mxu0 %v821
        %1185 = vmatpush2.bf16.msra.mxu0 %v820
        %1186 = vmatprep.subr.bf16.mxu0 %v817
        %1187 = vmatpush2.bf16.msra.mxu0 %v816
        %1188 = vmatprep.subr.bf16.mxu0 %v813
        %1189 = vmatpush2.bf16.msra.mxu0 %v812
        %1190 = vmatprep.subr.bf16.mxu0 %v809
        %1191 = vmatpush2.bf16.msra.mxu0 %v808
        %1192 = vmatprep.subr.bf16.mxu0 %v805
        %1193 = vmatpush2.bf16.msra.mxu0 %v804
        %1194 = vmatprep.subr.bf16.mxu0 %v801
        %1195 = vmatpush2.bf16.msra.mxu0 %v800
        %1196 = vmatprep.mubr.bf16.mxu0 %v437
        %1197 = vmatmul.mubr.bf16.gmra.mxu0 %v436
        %v1198 = vpop.f32.mrf.mxu0
        %v1199 = vadd.f32 %v357, %v1198
        %v1200 = vpop.f32.mrf.mxu0
        %v1201 = vadd.f32 %v361, %v1200
        %v1202 = vpop.f32.mrf.mxu0
        %v1203 = vadd.f32 %v357, %v1202
        %v1204 = vpop.f32.mrf.mxu0
        %v1205 = vadd.f32 %v361, %v1204
        %1206 = vmatprep.mubr.bf16.mxu0 %v440
        %1207 = vmatmul.mubr.bf16.gmra.mxu0 %v439
        %v1208 = vpop.f32.mrf.mxu0
        %v1209 = vadd.f32 %v357, %v1208
        %v1210 = vpop.f32.mrf.mxu0
        %v1211 = vadd.f32 %v361, %v1210
        %v1212 = vpop.f32.mrf.mxu0
        %v1213 = vadd.f32 %v357, %v1212
        %v1214 = vpop.f32.mrf.mxu0
        %v1215 = vadd.f32 %v361, %v1214
        %1216 = vmatprep.mubr.bf16.mxu0 %v443
        %1217 = vmatmul.mubr.bf16.gmra.mxu0 %v442
        %v1218 = vpop.f32.mrf.mxu0
        %v1219 = vadd.f32 %v357, %v1218
        %v1220 = vpop.f32.mrf.mxu0
        %v1221 = vadd.f32 %v361, %v1220
        %v1222 = vpop.f32.mrf.mxu0
        %v1223 = vadd.f32 %v357, %v1222
        %v1224 = vpop.f32.mrf.mxu0
        %v1225 = vadd.f32 %v361, %v1224
        %1226 = vmatprep.mubr.bf16.mxu0 %v446
        %1227 = vmatmul.mubr.bf16.gmra.mxu0 %v445
        %v1228 = vpop.f32.mrf.mxu0
        %v1229 = vadd.f32 %v357, %v1228
        %v1230 = vpop.f32.mrf.mxu0
        %v1231 = vadd.f32 %v361, %v1230
        %v1232 = vpop.f32.mrf.mxu0
        %v1233 = vadd.f32 %v357, %v1232
        %v1234 = vpop.f32.mrf.mxu0
        %v1235 = vadd.f32 %v361, %v1234
        %1236 = vmatprep.mubr.bf16.mxu0 %v449
        %1237 = vmatmul.mubr.bf16.gmra.mxu0 %v448
        %v1238 = vpop.f32.mrf.mxu0
        %v1239 = vadd.f32 %v357, %v1238
        %v1240 = vpop.f32.mrf.mxu0
        %v1241 = vadd.f32 %v361, %v1240
        %v1242 = vpop.f32.mrf.mxu0
        %v1243 = vadd.f32 %v357, %v1242
        %v1244 = vpop.f32.mrf.mxu0
        %v1245 = vadd.f32 %v361, %v1244
        %1246 = vmatprep.mubr.bf16.mxu0 %v452
        %1247 = vmatmul.mubr.bf16.gmra.mxu0 %v451
        %v1248 = vpop.f32.mrf.mxu0
        %v1249 = vadd.f32 %v357, %v1248
        %v1250 = vpop.f32.mrf.mxu0
        %v1251 = vadd.f32 %v361, %v1250
        %v1252 = vpop.f32.mrf.mxu0
        %v1253 = vadd.f32 %v357, %v1252
        %v1254 = vpop.f32.mrf.mxu0
        %v1255 = vadd.f32 %v361, %v1254
        %1256 = vmatprep.mubr.bf16.mxu0 %v455
        %1257 = vmatmul.mubr.bf16.gmra.mxu0 %v454
        %v1258 = vpop.f32.mrf.mxu0
        %v1259 = vadd.f32 %v357, %v1258
        %v1260 = vpop.f32.mrf.mxu0
        %v1261 = vadd.f32 %v361, %v1260
        %v1262 = vpop.f32.mrf.mxu0
        %v1263 = vadd.f32 %v357, %v1262
        %v1264 = vpop.f32.mrf.mxu0
        %v1265 = vadd.f32 %v361, %v1264
        %1266 = vdwg.mxu0
        %1267 = vmatprep.subr.bf16.mxu0 %v861
        %1268 = vmatpush1.bf16.msra.mxu0 %v860
        %1269 = vmatprep.subr.bf16.mxu0 %v857
        %1270 = vmatpush1.bf16.msra.mxu0 %v856
        %1271 = vmatprep.subr.bf16.mxu0 %v853
        %1272 = vmatpush1.bf16.msra.mxu0 %v852
        %1273 = vmatprep.subr.bf16.mxu0 %v849
        %1274 = vmatpush1.bf16.msra.mxu0 %v848
        %1275 = vmatprep.subr.bf16.mxu0 %v845
        %1276 = vmatpush1.bf16.msra.mxu0 %v844
        %1277 = vmatprep.subr.bf16.mxu0 %v841
        %1278 = vmatpush1.bf16.msra.mxu0 %v840
        %1279 = vmatprep.subr.bf16.mxu0 %v837
        %1280 = vmatpush1.bf16.msra.mxu0 %v836
        %1281 = vmatprep.subr.bf16.mxu0 %v833
        %1282 = vmatpush1.bf16.msra.mxu0 %v832
        %1283 = vmatprep.subr.bf16.mxu0 0
        %1284 = vmatpush2.bf16.msra.mxu0 0
        %1285 = vmatprep.subr.bf16.mxu0 0
        %1286 = vmatpush2.bf16.msra.mxu0 0
        %1287 = vmatprep.subr.bf16.mxu0 0
        %1288 = vmatpush2.bf16.msra.mxu0 0
        %1289 = vmatprep.subr.bf16.mxu0 0
        %1290 = vmatpush2.bf16.msra.mxu0 0
        %1291 = vmatprep.subr.bf16.mxu0 0
        %1292 = vmatpush2.bf16.msra.mxu0 0
        %1293 = vmatprep.subr.bf16.mxu0 0
        %1294 = vmatpush2.bf16.msra.mxu0 0
        %1295 = vmatprep.subr.bf16.mxu0 0
        %1296 = vmatpush2.bf16.msra.mxu0 0
        %1297 = vmatprep.subr.bf16.mxu0 0
        %1298 = vmatpush2.bf16.msra.mxu0 0
        %1299 = vmatprep.mubr.bf16.mxu0 0
        %1300 = vmatmul.mubr.bf16.gmra.mxu0 %v438
        %v1301 = vpop.f32.mrf.mxu0
        %v1302 = vadd.f32 %v1199, %v1301
        %v1303 = vpop.f32.mrf.mxu0
        %v1304 = vadd.f32 %v1201, %v1303
        %v1305 = vpop.f32.mrf.mxu0
        %v1306 = vadd.f32 %v1203, %v1305
        %v1307 = vpop.f32.mrf.mxu0
        %v1308 = vadd.f32 %v1205, %v1307
        %1309 = vmatprep.mubr.bf16.mxu0 0
        %1310 = vmatmul.mubr.bf16.gmra.mxu0 %v441
        %v1311 = vpop.f32.mrf.mxu0
        %v1312 = vadd.f32 %v1209, %v1311
        %v1313 = vpop.f32.mrf.mxu0
        %v1314 = vadd.f32 %v1211, %v1313
        %v1315 = vpop.f32.mrf.mxu0
        %v1316 = vadd.f32 %v1213, %v1315
        %v1317 = vpop.f32.mrf.mxu0
        %v1318 = vadd.f32 %v1215, %v1317
        %1319 = vmatprep.mubr.bf16.mxu0 0
        %1320 = vmatmul.mubr.bf16.gmra.mxu0 %v444
        %v1321 = vpop.f32.mrf.mxu0
        %v1322 = vadd.f32 %v1219, %v1321
        %v1323 = vpop.f32.mrf.mxu0
        %v1324 = vadd.f32 %v1221, %v1323
        %v1325 = vpop.f32.mrf.mxu0
        %v1326 = vadd.f32 %v1223, %v1325
        %v1327 = vpop.f32.mrf.mxu0
        %v1328 = vadd.f32 %v1225, %v1327
        %1329 = vmatprep.mubr.bf16.mxu0 0
        %1330 = vmatmul.mubr.bf16.gmra.mxu0 %v447
        %v1331 = vpop.f32.mrf.mxu0
        %v1332 = vadd.f32 %v1229, %v1331
        %v1333 = vpop.f32.mrf.mxu0
        %v1334 = vadd.f32 %v1231, %v1333
        %v1335 = vpop.f32.mrf.mxu0
        %v1336 = vadd.f32 %v1233, %v1335
        %v1337 = vpop.f32.mrf.mxu0
        %v1338 = vadd.f32 %v1235, %v1337
        %1339 = vmatprep.mubr.bf16.mxu0 0
        %1340 = vmatmul.mubr.bf16.gmra.mxu0 %v450
        %v1341 = vpop.f32.mrf.mxu0
        %v1342 = vadd.f32 %v1239, %v1341
        %v1343 = vpop.f32.mrf.mxu0
        %v1344 = vadd.f32 %v1241, %v1343
        %v1345 = vpop.f32.mrf.mxu0
        %v1346 = vadd.f32 %v1243, %v1345
        %v1347 = vpop.f32.mrf.mxu0
        %v1348 = vadd.f32 %v1245, %v1347
        %1349 = vmatprep.mubr.bf16.mxu0 0
        %1350 = vmatmul.mubr.bf16.gmra.mxu0 %v453
        %v1351 = vpop.f32.mrf.mxu0
        %v1352 = vadd.f32 %v1249, %v1351
        %v1353 = vpop.f32.mrf.mxu0
        %v1354 = vadd.f32 %v1251, %v1353
        %v1355 = vpop.f32.mrf.mxu0
        %v1356 = vadd.f32 %v1253, %v1355
        %v1357 = vpop.f32.mrf.mxu0
        %v1358 = vadd.f32 %v1255, %v1357
        %1359 = vmatprep.mubr.bf16.mxu0 0
        %1360 = vmatmul.mubr.bf16.gmra.mxu0 %v456
        %v1361 = vpop.f32.mrf.mxu0
        %v1362 = vadd.f32 %v1259, %v1361
        %v1363 = vpop.f32.mrf.mxu0
        %v1364 = vadd.f32 %v1261, %v1363
        %v1365 = vpop.f32.mrf.mxu0
        %v1366 = vadd.f32 %v1263, %v1365
        %v1367 = vpop.f32.mrf.mxu0
        %v1368 = vadd.f32 %v1265, %v1367
        %1369 = vdwg.mxu0
        %1370 = vst [vmem:[%s216] sm:$0xff] %v1096
        %1371 = vst [vmem:[%s216 + $0x8] sm:$0xff] %v1098
        %1372 = vst [vmem:[%s216 + $0x10] sm:$0xff] %v1302
        %1373 = vst [vmem:[%s216 + $0x18] sm:$0xff] %v1304
        %1374 = vst [vmem:[%s216 + $0x20] sm:$0xff] %v1100
        %1375 = vst [vmem:[%s216 + $0x28] sm:$0xff] %v1102
        %1376 = vst [vmem:[%s216 + $0x30] sm:$0xff] %v1306
        %1377 = vst [vmem:[%s216 + $0x38] sm:$0xff] %v1308
        %1378 = vst [vmem:[%s216 + $0x40] sm:$0xff] %v1106
        %1379 = vst [vmem:[%s216 + $0x48] sm:$0xff] %v1108
        %1380 = vst [vmem:[%s216 + $0x50] sm:$0xff] %v1312
        %1381 = vst [vmem:[%s216 + $0x58] sm:$0xff] %v1314
        %1382 = vst [vmem:[%s216 + $0x60] sm:$0xff] %v1110
        %1383 = vst [vmem:[%s216 + $0x68] sm:$0xff] %v1112
        %1384 = vst [vmem:[%s216 + $0x70] sm:$0xff] %v1316
        %1385 = vst [vmem:[%s216 + $0x78] sm:$0xff] %v1318
        %1386 = vst [vmem:[%s216 + $0x80] sm:$0xff] %v1116
        %1387 = vst [vmem:[%s216 + $0x88] sm:$0xff] %v1118
        %1388 = vst [vmem:[%s216 + $0x90] sm:$0xff] %v1322
        %1389 = vst [vmem:[%s216 + $0x98] sm:$0xff] %v1324
        %1390 = vst [vmem:[%s216 + $0xa0] sm:$0xff] %v1120
        %1391 = vst [vmem:[%s216 + $0xa8] sm:$0xff] %v1122
        %1392 = vst [vmem:[%s216 + $0xb0] sm:$0xff] %v1326
        %1393 = vst [vmem:[%s216 + $0xb8] sm:$0xff] %v1328
        %1394 = vst [vmem:[%s216 + $0xc0] sm:$0xff] %v1126
        %1395 = vst [vmem:[%s216 + $0xc8] sm:$0xff] %v1128
        %1396 = vst [vmem:[%s216 + $0xd0] sm:$0xff] %v1332
        %1397 = vst [vmem:[%s216 + $0xd8] sm:$0xff] %v1334
        %1398 = vst [vmem:[%s216 + $0xe0] sm:$0xff] %v1130
        %1399 = vst [vmem:[%s216 + $0xe8] sm:$0xff] %v1132
        %1400 = vst [vmem:[%s216 + $0xf0] sm:$0xff] %v1336
        %1401 = vst [vmem:[%s216 + $0xf8] sm:$0xff] %v1338
        %1402 = vst [vmem:[%s216 + $0x100] sm:$0xff] %v1136
        %1403 = vst [vmem:[%s216 + $0x108] sm:$0xff] %v1138
        %1404 = vst [vmem:[%s216 + $0x110] sm:$0xff] %v1342
        %1405 = vst [vmem:[%s216 + $0x118] sm:$0xff] %v1344
        %1406 = vst [vmem:[%s216 + $0x120] sm:$0xff] %v1140
        %1407 = vst [vmem:[%s216 + $0x128] sm:$0xff] %v1142
        %1408 = vst [vmem:[%s216 + $0x130] sm:$0xff] %v1346
        %1409 = vst [vmem:[%s216 + $0x138] sm:$0xff] %v1348
        %1410 = vst [vmem:[%s216 + $0x140] sm:$0xff] %v1146
        %1411 = vst [vmem:[%s216 + $0x148] sm:$0xff] %v1148
        %1412 = vst [vmem:[%s216 + $0x150] sm:$0xff] %v1352
        %1413 = vst [vmem:[%s216 + $0x158] sm:$0xff] %v1354
        %1414 = vst [vmem:[%s216 + $0x160] sm:$0xff] %v1150
        %1415 = vst [vmem:[%s216 + $0x168] sm:$0xff] %v1152
        %1416 = vst [vmem:[%s216 + $0x170] sm:$0xff] %v1356
        %1417 = vst [vmem:[%s216 + $0x178] sm:$0xff] %v1358
        %1418 = vst [vmem:[%s216 + $0x180] sm:$0xff] %v1156
        %1419 = vst [vmem:[%s216 + $0x188] sm:$0xff] %v1158
        %1420 = vst [vmem:[%s216 + $0x190] sm:$0xff] %v1362
        %1421 = vst [vmem:[%s216 + $0x198] sm:$0xff] %v1364
        %1422 = vst [vmem:[%s216 + $0x1a0] sm:$0xff] %v1160
        %1423 = vst [vmem:[%s216 + $0x1a8] sm:$0xff] %v1162
        %1424 = vst [vmem:[%s216 + $0x1b0] sm:$0xff] %v1366
        %1425 = vst [vmem:[%s216 + $0x1b8] sm:$0xff] %v1368
        %s1426 = sand.u32 %s97, 1
        %s1427 = scalar_lea.sflag [#allocation4], %s1426
        %s1428 = sand.u32 %s97, 1
        %s1429 = smul.addr %s1428, 448
        %s1430 = scalar_lea.vmem [#allocation8], %s1429
        // Predicated region
        $region45: #{tpu_custom_call.1} parent=31 // pred_check
          %p1431 = pneg %p107
        $region46: #{tpu_custom_call.1} parent=31 // pred_check_branch
          %1433 = sbr.rel (%p1431) target = $region48
        $region47: #{tpu_custom_call.1} parent=31 // pred_region
          %s1434 = smul.u32 14, %s21
          %s1436 = ssub.s32 7168, 7168
          %1437 = vsyncadd %s1427, %s1436
          %s1438 = smul.addr %s1434, 4
          %s1439 = smul.addr %s1438, 128
          %s1440 = scalar_lea.hbm %s3, %s1439
          %s1441 = sshll.u32 %s1430, 4
          %s1442 = int_to_ptr.vmem [resolvable:$true] %s1441
          %1447 = dma.vmem_to_hbm [thread:$0]  %s1442, 7168, %s1440, %s1427, 512, 512, 32
        $region48: #{tpu_custom_call.1} parent=31 // pred_fallthru
          _
      $region32: #{tpu_custom_call.1} parent=5 // pred_fallthru
        _
      %p1448 = scmp.le.s32.totalorder 2, %s16
      // Predicated region
      $region49: #{tpu_custom_call.1} parent=5 // pred_check
        %p1449 = pneg %p1448
      $region50: #{tpu_custom_call.1} parent=5 // pred_check_branch
        %1451 = sbr.rel (%p1449) target = $region52
      $region51: #{tpu_custom_call.1} parent=5 // pred_region
        %s1452 = ssub.s32 %s16, 2
        // Predicated region
        $region53: #{tpu_custom_call.1} parent=51 // pred_check
          %p1453 = pneg %p113
        $region54: #{tpu_custom_call.1} parent=51 // pred_check_branch
          %1455 = sbr.rel (%p1453) target = $region56
        $region55: #{tpu_custom_call.1} parent=51 // pred_region
          %s1456 = sand.u32 %s98, 1
          %s1457 = scalar_lea.sflag [#allocation4], %s1456
          %s1458 = sand.u32 %s98, 1
          %s1459 = smul.addr %s1458, 448
          %s1460 = scalar_lea.vmem [#allocation8], %s1459
          %1461 = dma.done %s1457, 7168
        $region56: #{tpu_custom_call.1} parent=51 // pred_fallthru
          _
      $region52: #{tpu_custom_call.1} parent=5 // pred_fallthru
        _
    $region6: #{tpu_custom_call.1} parent=1 // loop_footer
      %s20 = sadd.s32 1, %s16
    $region7: #{tpu_custom_call.1} parent=1 // loop_footer_branch
      %15 = sbr.rel target = $region3
    $region8: #{tpu_custom_call.1} parent=1 // loop_exit
      _
    %1462 = vsyncpa [#allocation3], 1
    %s1463 = scalar_lea.sflag [#allocation3], 1
    %1464 = vsyncpa %s1463, 1
    %1465 = vsyncpa [#allocation6], 1
    %1466 = vsyncpa [#allocation4], 1
    %s1467 = scalar_lea.sflag [#allocation4], 1
    %1468 = vsyncpa %s1467, 1

</llo_original>
